<compile_context>
chip_gen: v7x
topology: tpu7x:2x2x1
jax: 0.10.0
libtpu: 0.0.40
codegen_flags: <defaults>
</compile_context>

<pallas_src>
import functools

import jax
import jax.numpy as jnp
from jax.experimental import pallas as pl
from jax.experimental.pallas import tpu as pltpu


def mlp_kernel(x_ref, w1_ref, b1_ref, w2_ref, b2_ref, o_ref, *, num_chunks, chunk):
    # x_ref : (i, TB)  f32   batch on the lane (last) dim -> lane-dense loads
    # w1_ref: (n, i)   f32   PyTorch layout (out_features, in_features)
    # b1_ref: (n, 1)   f32   column bias
    # w2_ref: (n, 1)   f32   second-layer weights as a column
    # b2_ref: (1, 1)   f32   scalar bias in SMEM
    # o_ref : (1, TB)  f32   lane-dense output
    w1 = w1_ref[...]
    b1 = b1_ref[...]
    w2 = w2_ref[...]
    b2 = b2_ref[0, 0]
    i_dim = w1.shape[1]

    def body(c, carry):
        off = pl.multiple_of(c * chunk, 128)
        xc = x_ref[:, pl.ds(off, chunk)]                # (i, chunk) lane-dense load

        # Layer 1: unrolled VPU broadcast-FMA over the tiny input dim (i == 2). Exact f32,
        # no MXU round-trip.
        z1 = b1                                         # (n, 1) -> broadcasts
        for k in range(i_dim):                          # static, i == 2
            z1 = z1 + w1[:, k:k + 1] * xc[k:k + 1, :]   # (n,1)*(1,chunk) -> (n,chunk)
        y1 = jnp.tanh(z1)                               # (n, chunk), EUP

        # Layer 2: scale by the w2 column, reduce over the sublane axis (XLU slot),
        # add the SMEM scalar bias, tanh, lane-dense store.
        z2 = jnp.sum(w2 * y1, axis=0, keepdims=True) + b2        # (1, chunk)
        o_ref[:, pl.ds(off, chunk)] = jnp.tanh(z2).astype(o_ref.dtype)
        return carry

    jax.lax.fori_loop(0, num_chunks, body, 0)


def _round_up(x, m):
    return ((x + m - 1) // m) * m


def _plan(batch, tb_max):
    """Pick (tb, steps, chunk, num_chunks): tb * steps >= batch, tb % 128 == 0."""
    tb_max = max(128, _round_up(int(tb_max), 128))      # robustness: lane-multiple tile
    b128 = _round_up(batch, 128)
    if b128 <= tb_max:
        steps, tb = 1, b128                             # single block (small batch)
    else:
        steps = pl.cdiv(b128, tb_max)
        if steps % 2:                                   # even #steps >= 2: keeps both v7x TCs busy
            steps += 1
        tb = _round_up(pl.cdiv(b128, steps), 128)       # <= tb_max by construction
    chunk = next(c for c in (2048, 1024, 512, 256, 128) if tb % c == 0)
    return tb, steps, chunk, tb // chunk


def _mlp_forward_feature_major(xt, w1, b1, w2, b2, *, tb_max=8192):
    """xt: (i, B) feature-major input (batch on the fast axis). Returns (B, 1)."""
    i_dim, batch = xt.shape
    n = w1.shape[0]
    tb, steps, chunk, num_chunks = _plan(batch, tb_max)
    bp = tb * steps

    xt = xt.astype(jnp.float32)
    if bp != batch:
        xt = jnp.pad(xt, ((0, 0), (0, bp - batch)))     # padded cols are sliced off below

    w1f = w1.astype(jnp.float32)                        # (n, i)
    b1c = b1.astype(jnp.float32).reshape(n, 1)          # (n, 1)
    w2c = w2.astype(jnp.float32).reshape(n, 1)          # (n, 1) column
    b2s = b2.astype(jnp.float32).reshape(1, 1)          # (1, 1) scalar -> SMEM

    out_t = pl.pallas_call(
        functools.partial(mlp_kernel, num_chunks=num_chunks, chunk=chunk),
        out_shape=jax.ShapeDtypeStruct((1, bp), jnp.float32),
        grid=(steps,),
        in_specs=[
            pl.BlockSpec((i_dim, tb), lambda b: (0, b)),                      # x tiles stream
            pl.BlockSpec((n, i_dim), lambda b: (0, 0)),                       # w1 VMEM-resident
            pl.BlockSpec((n, 1), lambda b: (0, 0)),                           # b1 VMEM-resident
            pl.BlockSpec((n, 1), lambda b: (0, 0)),                           # w2 VMEM-resident
            pl.BlockSpec((1, 1), lambda b: (0, 0), memory_space=pltpu.SMEM),  # b2 scalar path
        ],
        out_specs=pl.BlockSpec((1, tb), lambda b: (0, b)),
        compiler_params=pltpu.CompilerParams(
            dimension_semantics=("parallel",),           # shards batch steps across TCs on v7x
            vmem_limit_bytes=32 * 1024 * 1024,           # > v5e's 16 MiB default, < v7x ~48 MiB budget
        ),
        cost_estimate=pl.CostEstimate(
            flops=2 * bp * (i_dim * n + n),
            transcendentals=bp * (n + 1),
            bytes_accessed=4 * (i_dim * bp + n * i_dim + 2 * n + 1 + bp),
        ),
    )(xt, w1f, b1c, w2c, b2s)

    return out_t[:, :batch].T                           # (B, 1); reshape of a (1, B) slab


# Preferred entry point when the producer can emit feature-major activations (no extra
# HBM pass over x at all).
mlp_forward_feature_major = jax.jit(_mlp_forward_feature_major, static_argnames=("tb_max",))


@functools.partial(jax.jit, static_argnames=("tb_max",))
def mlp_forward(x, w1, b1, w2, b2, tb_max=8192):
    """x: (B, i) natural PyTorch layout; w1: (n, i); b1: (n,); w2: (1, n); b2: (1,)."""
    # Layout plumbing only: the (B, i) -> (i, B) transpose is one extra HBM pass over x.
    # Upstream code that already has (or can cheaply produce) feature-major activations
    # should call mlp_forward_feature_major directly and skip it.
    return _mlp_forward_feature_major(x.T, w1, b1, w2, b2, tb_max=tb_max)


def init_params(key, i_dim, n):
    # PyTorch Linear layout: W (out, in), b (out,); default init U(-1/sqrt(fan_in), +).
    k1, k2, k3, k4 = jax.random.split(key, 4)
    bound1 = 1.0 / jnp.sqrt(i_dim)
    bound2 = 1.0 / jnp.sqrt(n)
    w1 = jax.random.uniform(k1, (n, i_dim), jnp.float32, -bound1, bound1)
    b1 = jax.random.uniform(k2, (n,), jnp.float32, -bound1, bound1)
    w2 = jax.random.uniform(k3, (1, n), jnp.float32, -bound2, bound2)
    b2 = jax.random.uniform(k4, (1,), jnp.float32, -bound2, bound2)
    return w1, b1, w2, b2


def reference(x, w1, b1, w2, b2):
    # Exact-f32 reference (kernel math is exact f32 by construction).
    hp = jax.lax.Precision.HIGHEST
    y1 = jnp.tanh(jnp.dot(x, w1.T, precision=hp) + b1)
    return jnp.tanh(jnp.dot(y1, w2.T, precision=hp) + b2)


if __name__ == "__main__":
    i_dim, n = 2, 10
    key = jax.random.PRNGKey(0)
    kx1, kx2, kp = jax.random.split(key, 3)
    w1, b1, w2, b2 = init_params(kp, i_dim, n)

    # Case 1: tiny batch (single 128-lane-padded block, 1 grid step, 1 chunk).
    B1 = 8
    x1 = jax.random.normal(kx1, (B1, i_dim), jnp.float32)
    out1 = jax.block_until_ready(mlp_forward(x1, w1, b1, w2, b2))
    assert out1.shape == (B1, 1)
    assert jnp.allclose(out1, reference(x1, w1, b1, w2, b2), atol=1e-5, rtol=1e-5)

    # Case 2: ragged batch larger than one block -> even multi-step parallel grid
    # (4 steps of TB=5120), in-kernel chunk loop (5 x 1024 lanes), lane-padding path.
    B2 = 20000
    x2 = jax.random.normal(kx2, (B2, i_dim), jnp.float32)
    ref2 = reference(x2, w1, b1, w2, b2)
    out2 = jax.block_until_ready(mlp_forward(x2, w1, b1, w2, b2, tb_max=8192))
    assert out2.shape == (B2, 1)
    assert jnp.allclose(out2, ref2, atol=1e-5, rtol=1e-5)

    # Case 3: feature-major entry point (no wrapper transpose of x).
    out3 = jax.block_until_ready(
        mlp_forward_feature_major(x2.T, w1, b1, w2, b2, tb_max=8192))
    assert out3.shape == (B2, 1)
    assert jnp.allclose(out3, ref2, atol=1e-5, rtol=1e-5)

    print("KERNEL_OK")
</pallas_src>

<mosaic_0001>
module attributes {stable_mosaic.version = 11 : i64} {
  func.func @mlp_kernel(%arg0: i32, %arg1: memref<2x128xf32, #tpu.memory_space<vmem>>, %arg2: memref<10x2xf32, #tpu.memory_space<vmem>>, %arg3: memref<10x1xf32, #tpu.memory_space<vmem>>, %arg4: memref<10x1xf32, #tpu.memory_space<vmem>>, %arg5: memref<1x1xf32, #tpu.memory_space<smem>>, %arg6: memref<1x128xf32, #tpu.memory_space<vmem>>) attributes {dimension_semantics = [#tpu.dimension_semantics<parallel>], iteration_bounds = array<i64: 1>, scalar_prefetch = 0 : i64, scratch_operands = 0 : i64, tpu.core_type = #tpu.core_type<tc>, window_params = [{transform_indices = @transform_0, window_bounds = array<i64: 2, 128>}, {pipeline_mode = #tpu.pipeline_mode<synchronous>, transform_indices = @transform_1, window_bounds = array<i64: 10, 2>}, {pipeline_mode = #tpu.pipeline_mode<synchronous>, transform_indices = @transform_2, window_bounds = array<i64: 10, 1>}, {pipeline_mode = #tpu.pipeline_mode<synchronous>, transform_indices = @transform_3, window_bounds = array<i64: 10, 1>}, {transform_indices = @transform_4, window_bounds = array<i64: 1, 1>}, {transform_indices = @transform_5, window_bounds = array<i64: 1, 128>}]} {
    %c0 = arith.constant 0 : index
    %c0_0 = arith.constant 0 : index
    %0 = vector.load %arg2[%c0, %c0_0] : memref<10x2xf32, #tpu.memory_space<vmem>>, vector<10x2xf32>
    %c0_1 = arith.constant 0 : index
    %c0_2 = arith.constant 0 : index
    %1 = vector.load %arg3[%c0_1, %c0_2] : memref<10x1xf32, #tpu.memory_space<vmem>>, vector<10x1xf32>
    %c0_3 = arith.constant 0 : index
    %c0_4 = arith.constant 0 : index
    %2 = vector.load %arg4[%c0_3, %c0_4] : memref<10x1xf32, #tpu.memory_space<vmem>>, vector<10x1xf32>
    %c0_5 = arith.constant 0 : index
    %c0_6 = arith.constant 0 : index
    %3 = memref.load %arg5[%c0_5, %c0_6] : memref<1x1xf32, #tpu.memory_space<smem>>
    %c0_i32 = arith.constant 0 : i32
    %c128_i32 = arith.constant 128 : i32
    %4 = arith.muli %c0_i32, %c128_i32 : i32
    %5 = tpu.assume_multiple %4, 128 : i32
    %c0_7 = arith.constant 0 : index
    %6 = arith.index_cast %5 : i32 to index
    %7 = vector.load %arg1[%c0_7, %6] : memref<2x128xf32, #tpu.memory_space<vmem>>, vector<2x128xf32>
    %8 = vector.extract_strided_slice %0 {offsets = [0, 0], sizes = [10, 1], strides = [1, 1]} : vector<10x2xf32> to vector<10x1xf32>
    %9 = vector.extract_strided_slice %7 {offsets = [0, 0], sizes = [1, 128], strides = [1, 1]} : vector<2x128xf32> to vector<1x128xf32>
    %10 = vector.broadcast %8 : vector<10x1xf32> to vector<10x128xf32>
    %11 = vector.broadcast %9 : vector<1x128xf32> to vector<10x128xf32>
    %12 = arith.mulf %10, %11 : vector<10x128xf32>
    %13 = vector.broadcast %1 : vector<10x1xf32> to vector<10x128xf32>
    %14 = arith.addf %13, %12 : vector<10x128xf32>
    %15 = vector.extract_strided_slice %0 {offsets = [0, 1], sizes = [10, 1], strides = [1, 1]} : vector<10x2xf32> to vector<10x1xf32>
    %16 = vector.extract_strided_slice %7 {offsets = [1, 0], sizes = [1, 128], strides = [1, 1]} : vector<2x128xf32> to vector<1x128xf32>
    %17 = vector.broadcast %15 : vector<10x1xf32> to vector<10x128xf32>
    %18 = vector.broadcast %16 : vector<1x128xf32> to vector<10x128xf32>
    %19 = arith.mulf %17, %18 : vector<10x128xf32>
    %20 = arith.addf %14, %19 : vector<10x128xf32>
    %21 = math.tanh %20 : vector<10x128xf32>
    %22 = vector.broadcast %2 : vector<10x1xf32> to vector<10x128xf32>
    %23 = arith.mulf %22, %21 : vector<10x128xf32>
    %cst = arith.constant dense<0.000000e+00> : vector<128xf32>
    %24 = vector.multi_reduction <add>, %23, %cst [0] : vector<10x128xf32> to vector<128xf32>
    %25 = vector.shape_cast %24 : vector<128xf32> to vector<1x128xf32>
    %26 = vector.broadcast %3 : f32 to vector<1x128xf32>
    %27 = arith.addf %25, %26 : vector<1x128xf32>
    %28 = math.tanh %27 : vector<1x128xf32>
    %c0_8 = arith.constant 0 : index
    %29 = arith.index_cast %5 : i32 to index
    %30 = vector.load %arg6[%c0_8, %29] : memref<1x128xf32, #tpu.memory_space<vmem>>, vector<1x128xf32>
    tpu.vector_store %arg6[%c0_8, %29], %28 {strides = array<i32>} : memref<1x128xf32, #tpu.memory_space<vmem>>, vector<1x128xf32>,
    %c1_i32 = arith.constant 1 : i32
    return
  }
  func.func @transform_0(%arg0: i32) -> (i32, i32) {
    %c0_i32 = arith.constant 0 : i32
    %c0_i32_0 = arith.constant 0 : i32
    return %c0_i32, %arg0 : i32, i32
  }
  func.func @transform_1(%arg0: i32) -> (i32, i32) {
    %c0_i32 = arith.constant 0 : i32
    %c0_i32_0 = arith.constant 0 : i32
    %c0_i32_1 = arith.constant 0 : i32
    return %c0_i32, %c0_i32_0 : i32, i32
  }
  func.func @transform_2(%arg0: i32) -> (i32, i32) {
    %c0_i32 = arith.constant 0 : i32
    %c0_i32_0 = arith.constant 0 : i32
    %c0_i32_1 = arith.constant 0 : i32
    return %c0_i32, %c0_i32_0 : i32, i32
  }
  func.func @transform_3(%arg0: i32) -> (i32, i32) {
    %c0_i32 = arith.constant 0 : i32
    %c0_i32_0 = arith.constant 0 : i32
    %c0_i32_1 = arith.constant 0 : i32
    return %c0_i32, %c0_i32_0 : i32, i32
  }
  func.func @transform_4(%arg0: i32) -> (i32, i32) {
    %c0_i32 = arith.constant 0 : i32
    %c0_i32_0 = arith.constant 0 : i32
    %c0_i32_1 = arith.constant 0 : i32
    return %c0_i32, %c0_i32_0 : i32, i32
  }
  func.func @transform_5(%arg0: i32) -> (i32, i32) {
    %c0_i32 = arith.constant 0 : i32
    %c0_i32_0 = arith.constant 0 : i32
    return %c0_i32, %arg0 : i32, i32
  }
}

</mosaic_0001>

<llo_original>
// kernel: mlp_forward.1
$region0: #{mlp_forward.1}
  #allocation0 [shape = 'u32[]', space=smem, size = 0x4, offset = 0x4, fixed_abs, tag = 'smem constant byte address 0x4 - core index']
  #allocation1 [shape = 'u32[144,128]{1,0:T(1,128)}', space=vmem, size = 0x12000, scoped, tag = 'internal scratch']
  #allocation2 [shape = 'f32[1,1]{1,0:T(1,128)S(6)}', space=smem, size = 0x200, scoped, tag = 'scoped memory for mlp_forward.1']
  %s0 = inlined_call_operand.vmem [shape: f32[2,128], index: 0, kind: input, shape index: {}]
  %s1 = inlined_call_operand.vmem [shape: f32[10,2], index: 1, kind: input, shape index: {}]
  %s2 = inlined_call_operand.vmem [shape: f32[10,1], index: 2, kind: input, shape index: {}]
  %s3 = inlined_call_operand.vmem [shape: f32[10,1], index: 3, kind: input, shape index: {}]
  %s4 = inlined_call_operand.<no memory space> [shape: f32[1,1], index: 4, kind: input, shape index: {}]
  %s5 = inlined_call_operand.vmem [shape: f32[1,128], index: 5, kind: output, shape index: {}]
  %s6 = sld [smem:[#allocation0]]
  $region30: #{mlp_forward.1} parent=0
    _
  %s8 = ssub.s32 1, %s6
  %s9 = scalar_select 0, %s8, %s6
  %10 = sst [smem:[#allocation2]] %s4
  // Predicated region
  $region2: #{mlp_forward.1} parent=0 // pred_check
    _
  $region3: #{mlp_forward.1} parent=0 // pred_check_branch
    %12 = sbr.rel (0) target = $region5
  $region4: #{mlp_forward.1} parent=0 // pred_region
    _
  $region5: #{mlp_forward.1} parent=0 // pred_fallthru
    _
  // Predicated region
  $region6: #{mlp_forward.1} parent=0 // pred_check
    _
  $region7: #{mlp_forward.1} parent=0 // pred_check_branch
    %14 = sbr.rel (0) target = $region9
  $region8: #{mlp_forward.1} parent=0 // pred_region
    _
  $region9: #{mlp_forward.1} parent=0 // pred_fallthru
    _
  // Predicated region
  $region10: #{mlp_forward.1} parent=0 // pred_check
    _
  $region11: #{mlp_forward.1} parent=0 // pred_check_branch
    %16 = sbr.rel (0) target = $region13
  $region12: #{mlp_forward.1} parent=0 // pred_region
    _
  $region13: #{mlp_forward.1} parent=0 // pred_fallthru
    _
  // Predicated region
  $region14: #{mlp_forward.1} parent=0 // pred_check
    _
  $region15: #{mlp_forward.1} parent=0 // pred_check_branch
    %18 = sbr.rel (0) target = $region17
  $region16: #{mlp_forward.1} parent=0 // pred_region
    _
  $region17: #{mlp_forward.1} parent=0 // pred_fallthru
    _
  // Predicated region
  $region18: #{mlp_forward.1} parent=0 // pred_check
    _
  $region19: #{mlp_forward.1} parent=0 // pred_check_branch
    %20 = sbr.rel (0) target = $region21
  $region20: #{mlp_forward.1} parent=0 // pred_region
    _
  $region21: #{mlp_forward.1} parent=0 // pred_fallthru
    _
  %v21 = vld [vmem:[%s1] sm:$0xff]
  %v22 = vld [vmem:[%s1 + $0x8] sm:$0x3]
  %v23 = vld [vmem:[%s2] sm:$0xff]
  %v24 = vld [vmem:[%s2 + $0x8] sm:$0x3]
  %v25 = vld [vmem:[%s3] sm:$0xff]
  %v26 = vld [vmem:[%s3 + $0x8] sm:$0x3]
  %s27 = sld [smem:[#allocation2]]
  %v28 = vld [vmem:[%s0] sm:$0x3]
  %30 = vset.pattern.permute.xlu0 0
  %31 = vperm.xlu0 %30, %v21
  %v32 = vpop.permute.xlu0 %31
  %35 = vset.pattern.permute.xlu0 0
  %36 = vperm.xlu0 %35, %v22
  %v37 = vpop.permute.xlu0 %36
  %v39 = vlaneseq
  %v40 = vshrl.u32 %v39, 7
  %v41 = vsub.s32 0, %v40
  %v42 = vrot.slane %v28, %v41
  %v43 = vmul.f32 %v32, %v42
  %v44 = vmul.f32 %v37, %v42
  %46 = vset.pattern.permute.xlu0 0
  %47 = vperm.xlu0 %46, %v23
  %v48 = vpop.permute.xlu0 %47
  %51 = vset.pattern.permute.xlu0 0
  %52 = vperm.xlu0 %51, %v24
  %v53 = vpop.permute.xlu0 %52
  %v55 = vadd.f32 %v48, %v43
  %v56 = vadd.f32 %v53, %v44
  %57 = vset.pattern.permute.xlu0 1
  %58 = vperm.xlu0 %57, %v21
  %v59 = vpop.permute.xlu0 %58
  %61 = vset.pattern.permute.xlu0 1
  %62 = vperm.xlu0 %61, %v22
  %v63 = vpop.permute.xlu0 %62
  %v65 = vlaneseq
  %v66 = vshrl.u32 %v65, 7
  %v67 = vsub.s32 1, %v66
  %v68 = vrot.slane %v28, %v67
  %v69 = vmul.f32 %v59, %v68
  %v70 = vmul.f32 %v63, %v68
  %v71 = vadd.f32 %v55, %v69
  %v72 = vadd.f32 %v56, %v70
  %v73 = vtanh.pop %v71
  %v74 = vtanh.pop %v72
  %76 = vset.pattern.permute.xlu0 0
  %77 = vperm.xlu0 %76, %v25
  %v78 = vpop.permute.xlu0 %77
  %81 = vset.pattern.permute.xlu0 0
  %82 = vperm.xlu0 %81, %v26
  %v83 = vpop.permute.xlu0 %82
  %v85 = vmul.f32 %v78, %v73
  %v86 = vmul.f32 %v83, %v74
  %vm87 = vcmask 1041408
  %v88 = vsel %vm87, %v86, 0.0
  %v89 = vadd.f32 %v85, %v88
  %v90 = vrot.slane %v89, 4
  %v91 = vadd.f32 %v89, %v90
  %v92 = vrot.slane %v91, 2
  %v93 = vadd.f32 %v91, %v92
  %v94 = vrot.slane %v93, 1
  %v95 = vadd.f32 %v93, %v94
  %v96 = vstv %s27
  %v97 = vadd.f32 %v95, %v96
  %v98 = vtanh.pop %v97
  %99 = vst [vmem:[%s5] sm:$0x1] %v98
  // Predicated region
  $region22: #{mlp_forward.1} parent=0 // pred_check
    _
  $region23: #{mlp_forward.1} parent=0 // pred_check_branch
    %101 = sbr.rel (0) target = $region25
  $region24: #{mlp_forward.1} parent=0 // pred_region
    _
  $region25: #{mlp_forward.1} parent=0 // pred_fallthru
    _
  // Predicated region
  $region26: #{mlp_forward.1} parent=0 // pred_check
    _
  $region27: #{mlp_forward.1} parent=0 // pred_check_branch
    %103 = sbr.rel (0) target = $region29
  $region28: #{mlp_forward.1} parent=0 // pred_region
    _
  $region29: #{mlp_forward.1} parent=0 // pred_fallthru
    _

</llo_original>
